<compile_context>
chip_gen: v6e
topology: v6e:2x2x1
jax: 0.10.0
libtpu: 0.0.40
codegen_flags: <defaults>
</compile_context>

<pallas_src>
import jax
import jax.numpy as jnp
from jax import lax
from jax.experimental import pallas as pl
from jax.experimental.pallas import tpu as pltpu


def _mlp_kernel(x_ref, w1_ref, b1_ref, w2_ref, b2_ref, w3_ref, b3_ref, o_ref):
    # Layer 1 (MXU): x arrives f32 (single HBM stream); convert to bf16 on the VPU here so
    # the cast hides under the x DMA / MXU instead of costing a separate XLA pass (#2).
    x = x_ref[...].astype(jnp.bfloat16)
    h1 = jnp.dot(x, w1_ref[...], preferred_element_type=jnp.float32)
    h1 = jnp.maximum(h1 + b1_ref[...], 0.0)          # Dropout(0.5) = identity in eval mode

    # Layer 2 (MXU): re-quantize activations to bf16 for the MXU fast path, f32 accumulate.
    h2 = jnp.dot(h1.astype(jnp.bfloat16), w2_ref[...],
                 preferred_element_type=jnp.float32)
    h2 = jnp.maximum(h2 + b2_ref[...], 0.0)

    # Layer 3: out_dim == 1.  Contract the single w3 row against h2's feature dim
    # (q·kᵀ-style dot_general) so the result is already a lane-major (1, tb) row — the
    # store is an unmasked contiguous row instead of a (tb, 1) strided column (#1).
    logits = lax.dot_general(
        w3_ref[...], h2, (((1,), (1,)), ((), ())),
        preferred_element_type=jnp.float32)           # (1, tb)
    o_ref[0] = (logits + b3_ref[0, 0]).astype(o_ref.dtype)


def _round_up(x, m):
    return (x + m - 1) // m * m


def _pick_batch_tile(B):
    """Returns (tile_rows, num_tiles). Tiles are multiples of 8, capped at 512 rows,
    with >=2 (even) tiles for non-tiny batches so both v7x TensorCores get work (#4/#5)."""
    if B <= 16:
        return _round_up(B, 8), 1          # weight-DMA / launch bound; one step is enough
    n_tiles = max(2, -(-B // 512))
    if n_tiles % 2:
        n_tiles += 1                       # even step count keeps the two v7x TCs balanced
    tb = _round_up(-(-B // n_tiles), 8)
    return tb, n_tiles


@jax.jit
def lers_recommendation_forward(x, prep):
    """Fused BNN-MLP forward.

    x:    [B, in_dim] float32.
    prep: prepare_params(...) output (bf16 w1/w2, f32 biases, w3 row, b3 scalar).
    """
    B, in_dim = x.shape
    h1_dim = prep["w1"].shape[1]
    h2_dim = prep["w2"].shape[1]

    tb, n_tiles = _pick_batch_tile(B)
    b_pad = tb * n_tiles

    xf = x.astype(jnp.float32)             # no wrapper bf16 cast (#2); kernel converts
    if b_pad != B:
        xf = jnp.pad(xf, ((0, b_pad - B), (0, 0)))

    # Constant index_map -> fetched once, VMEM-resident across all grid steps.
    resident = lambda shape: pl.BlockSpec(shape, lambda i: (0, 0))

    out = pl.pallas_call(
        _mlp_kernel,
        out_shape=jax.ShapeDtypeStruct((n_tiles, 1, tb), jnp.float32),
        grid=(n_tiles,),
        in_specs=[
            pl.BlockSpec((tb, in_dim), lambda i: (i, 0)),        # x tile: pipelined per step
            resident((in_dim, h1_dim)),                          # w1 (bf16), VMEM-resident
            resident((1, h1_dim)),                               # b1 (f32)
            resident((h1_dim, h2_dim)),                          # w2 (bf16)
            resident((1, h2_dim)),                               # b2 (f32)
            resident((1, h2_dim)),                               # w3 row (f32)
            pl.BlockSpec(memory_space=pltpu.MemorySpace.SMEM),   # b3 scalar
        ],
        # Lane-dense output: each grid step writes one contiguous (1, tb) row (#1).
        out_specs=pl.BlockSpec((1, 1, tb), lambda i: (i, 0, 0)),
        compiler_params=pltpu.CompilerParams(
            # Batch tiles are independent -> shard across v7x's 2 TensorCores
            # (harmless no-op on v5e/v6e).  VMEM use < 5 MiB; no limit override needed.
            dimension_semantics=("parallel",),
        ),
    )(xf, prep["w1"], prep["b1"], prep["w2"], prep["b2"], prep["w3"], prep["b3"])

    out = out.reshape(b_pad, 1)            # tiles are row-contiguous: (n_tiles,1,tb)->(b_pad,1)
    return out[:B] if b_pad != B else out


def prepare_params(params):
    """One-time cast/reshape of sampled weights into kernel-ready form (#6).

    Called once (outside the per-call forward) so the f32->bf16 weight conversion is not
    re-done — and re-read/re-written in HBM — on every forward."""
    return {
        "w1": params["w1"].astype(jnp.bfloat16),
        "b1": params["b1"].reshape(1, -1).astype(jnp.float32),
        "w2": params["w2"].astype(jnp.bfloat16),
        "b2": params["b2"].reshape(1, -1).astype(jnp.float32),
        "w3": params["w3"].reshape(1, -1).astype(jnp.float32),   # (1, h2_dim) row
        "b3": params["b3"].reshape(1, 1).astype(jnp.float32),    # SMEM scalar
    }


def sample_bayes_linear(key, in_features, out_features, prior_sigma=0.1):
    """Deterministic synthetic BayesLinear: W = W_mu + exp(log_sigma) * eps."""
    k_mu_w, k_eps_w, k_mu_b, k_eps_b = jax.random.split(key, 4)
    stdv = 1.0 / jnp.sqrt(jnp.float32(in_features))
    w_mu = jax.random.uniform(k_mu_w, (in_features, out_features), jnp.float32,
                              minval=-stdv, maxval=stdv)
    b_mu = jax.random.uniform(k_mu_b, (1, out_features), jnp.float32,
                              minval=-stdv, maxval=stdv)
    log_sigma = jnp.log(jnp.float32(prior_sigma))
    w = w_mu + jnp.exp(log_sigma) * jax.random.normal(
        k_eps_w, (in_features, out_features), jnp.float32)
    b = b_mu + jnp.exp(log_sigma) * jax.random.normal(
        k_eps_b, (1, out_features), jnp.float32)
    return w, b


def build_params(key, in_dim=811, h1_dim=256, h2_dim=64, out_dim=1):
    k1, k2, k3 = jax.random.split(key, 3)
    w1, b1 = sample_bayes_linear(k1, in_dim, h1_dim)
    w2, b2 = sample_bayes_linear(k2, h1_dim, h2_dim)
    w3, b3 = sample_bayes_linear(k3, h2_dim, out_dim)
    return {"w1": w1, "b1": b1, "w2": w2, "b2": b2, "w3": w3, "b3": b3}


def reference_forward(x, p):
    """Pure-JAX reference mirroring the kernel's bf16-storage / f32-accumulate numerics.
    (An all-f32 PyTorch-exact path would simply keep w1/w2/x in f32; bf16 storage is a
    deliberate bandwidth/MXU trade-off, bounded-error for K<=811 with f32 accumulation.)"""
    h1 = jnp.dot(x.astype(jnp.bfloat16), p["w1"].astype(jnp.bfloat16),
                 preferred_element_type=jnp.float32)
    h1 = jnp.maximum(h1 + p["b1"], 0.0)
    h2 = jnp.dot(h1.astype(jnp.bfloat16), p["w2"].astype(jnp.bfloat16),
                 preferred_element_type=jnp.float32)
    h2 = jnp.maximum(h2 + p["b2"], 0.0)
    return jnp.dot(h2, p["w3"], preferred_element_type=jnp.float32) + p["b3"]


if __name__ == "__main__":
    key = jax.random.PRNGKey(0)
    k_x, k_x2, k_p = jax.random.split(key, 3)

    IN_DIM = 811                                     # module's in_dim
    params = build_params(k_p, in_dim=IN_DIM, h1_dim=256, h2_dim=64, out_dim=1)
    prep = prepare_params(params)                    # one-time weight cast/reshape (#6)

    # Small-batch case (single tile, matches the module's typical per-user call).
    B1 = 8
    x1 = jax.random.normal(k_x, (B1, IN_DIM), jnp.float32)
    out1 = jax.block_until_ready(lers_recommendation_forward(x1, prep))
    ref1 = reference_forward(x1, params)
    assert out1.shape == (B1, 1), out1.shape
    assert jnp.allclose(out1, ref1, atol=1e-2, rtol=1e-2), "mismatch vs JAX reference (B=8)"

    # Multi-tile case (exercises batch padding, 2 parallel tiles, lane-dense writeback).
    B2 = 50
    x2 = jax.random.normal(k_x2, (B2, IN_DIM), jnp.float32)
    out2 = jax.block_until_ready(lers_recommendation_forward(x2, prep))
    ref2 = reference_forward(x2, params)
    assert out2.shape == (B2, 1), out2.shape
    assert jnp.allclose(out2, ref2, atol=1e-2, rtol=1e-2), "mismatch vs JAX reference (B=50)"

    print("KERNEL_OK")
</pallas_src>

<mosaic_0001>
module attributes {stable_mosaic.version = 11 : i64} {
  func.func @_mlp_kernel(%arg0: i32, %arg1: memref<8x811xf32, #tpu.memory_space<vmem>>, %arg2: memref<811x256xbf16, #tpu.memory_space<vmem>>, %arg3: memref<1x256xf32, #tpu.memory_space<vmem>>, %arg4: memref<256x64xbf16, #tpu.memory_space<vmem>>, %arg5: memref<1x64xf32, #tpu.memory_space<vmem>>, %arg6: memref<1x64xf32, #tpu.memory_space<vmem>>, %arg7: memref<1x1xf32, #tpu.memory_space<smem>>, %arg8: memref<1x1x8xf32, #tpu.memory_space<vmem>>) attributes {dimension_semantics = [#tpu.dimension_semantics<parallel>], iteration_bounds = array<i64: 1>, scalar_prefetch = 0 : i64, scratch_operands = 0 : i64, tpu.core_type = #tpu.core_type<tc>, window_params = [{transform_indices = @transform_0, window_bounds = array<i64: 8, 811>}, {pipeline_mode = #tpu.pipeline_mode<synchronous>, transform_indices = @transform_1, window_bounds = array<i64: 811, 256>}, {pipeline_mode = #tpu.pipeline_mode<synchronous>, transform_indices = @transform_2, window_bounds = array<i64: 1, 256>}, {pipeline_mode = #tpu.pipeline_mode<synchronous>, transform_indices = @transform_3, window_bounds = array<i64: 256, 64>}, {pipeline_mode = #tpu.pipeline_mode<synchronous>, transform_indices = @transform_4, window_bounds = array<i64: 1, 64>}, {pipeline_mode = #tpu.pipeline_mode<synchronous>, transform_indices = @transform_5, window_bounds = array<i64: 1, 64>}, {transform_indices = @transform_6, window_bounds = array<i64: 1, 1>}, {transform_indices = @transform_7, window_bounds = array<i64: 1, 1, 8>}]} {
    %c0 = arith.constant 0 : index
    %c0_0 = arith.constant 0 : index
    %0 = vector.load %arg1[%c0, %c0_0] : memref<8x811xf32, #tpu.memory_space<vmem>>, vector<8x811xf32>
    %1 = arith.truncf %0 : vector<8x811xf32> to vector<8x811xbf16>
    %c0_1 = arith.constant 0 : index
    %c0_2 = arith.constant 0 : index
    %2 = vector.load %arg2[%c0_1, %c0_2] : memref<811x256xbf16, #tpu.memory_space<vmem>>, vector<811x256xbf16>
    %cst = arith.constant dense<0.000000e+00> : vector<8x256xf32>
    %3 = tpu.matmul %1, %2, %cst {dimension_numbers = #tpu.dot_dimension_numbers<[1], [0], [0], [1], [0, 0, 1, 1], [], []>} : vector<8x811xbf16>, vector<811x256xbf16>, vector<8x256xf32> -> vector<8x256xf32>
    %c0_3 = arith.constant 0 : index
    %c0_4 = arith.constant 0 : index
    %4 = vector.load %arg3[%c0_3, %c0_4] : memref<1x256xf32, #tpu.memory_space<vmem>>, vector<1x256xf32>
    %5 = vector.broadcast %4 : vector<1x256xf32> to vector<8x256xf32>
    %6 = arith.addf %3, %5 : vector<8x256xf32>
    %cst_5 = arith.constant 0.000000e+00 : f32
    %7 = vector.broadcast %cst_5 : f32 to vector<8x256xf32>
    %8 = arith.maximumf %6, %7 : vector<8x256xf32>
    %9 = arith.truncf %8 : vector<8x256xf32> to vector<8x256xbf16>
    %c0_6 = arith.constant 0 : index
    %c0_7 = arith.constant 0 : index
    %10 = vector.load %arg4[%c0_6, %c0_7] : memref<256x64xbf16, #tpu.memory_space<vmem>>, vector<256x64xbf16>
    %cst_8 = arith.constant dense<0.000000e+00> : vector<8x64xf32>
    %11 = tpu.matmul %9, %10, %cst_8 {dimension_numbers = #tpu.dot_dimension_numbers<[1], [0], [0], [1], [0, 0, 1, 1], [], []>} : vector<8x256xbf16>, vector<256x64xbf16>, vector<8x64xf32> -> vector<8x64xf32>
    %c0_9 = arith.constant 0 : index
    %c0_10 = arith.constant 0 : index
    %12 = vector.load %arg5[%c0_9, %c0_10] : memref<1x64xf32, #tpu.memory_space<vmem>>, vector<1x64xf32>
    %13 = vector.broadcast %12 : vector<1x64xf32> to vector<8x64xf32>
    %14 = arith.addf %11, %13 : vector<8x64xf32>
    %cst_11 = arith.constant 0.000000e+00 : f32
    %15 = vector.broadcast %cst_11 : f32 to vector<8x64xf32>
    %16 = arith.maximumf %14, %15 : vector<8x64xf32>
    %c0_12 = arith.constant 0 : index
    %c0_13 = arith.constant 0 : index
    %17 = vector.load %arg6[%c0_12, %c0_13] : memref<1x64xf32, #tpu.memory_space<vmem>>, vector<1x64xf32>
    %cst_14 = arith.constant dense<0.000000e+00> : vector<1x8xf32>
    %18 = tpu.matmul %17, %16, %cst_14 {dimension_numbers = #tpu.dot_dimension_numbers<[1], [1], [0], [0], [0, 0, 1, 0], [], []>} : vector<1x64xf32>, vector<8x64xf32>, vector<1x8xf32> -> vector<1x8xf32>
    %c0_15 = arith.constant 0 : index
    %c0_16 = arith.constant 0 : index
    %19 = memref.load %arg7[%c0_15, %c0_16] : memref<1x1xf32, #tpu.memory_space<smem>>
    %20 = vector.broadcast %19 : f32 to vector<1x8xf32>
    %21 = arith.addf %18, %20 : vector<1x8xf32>
    %c0_17 = arith.constant 0 : index
    %c0_18 = arith.constant 0 : index
    %c0_19 = arith.constant 0 : index
    %22 = vector.load %arg8[%c0_17, %c0_18, %c0_19] : memref<1x1x8xf32, #tpu.memory_space<vmem>>, vector<1x1x8xf32>
    %23 = vector.shape_cast %22 : vector<1x1x8xf32> to vector<1x8xf32>
    %24 = vector.shape_cast %21 : vector<1x8xf32> to vector<1x1x8xf32>
    tpu.vector_store %arg8[%c0_17, %c0_18, %c0_19], %24 {strides = array<i32>} : memref<1x1x8xf32, #tpu.memory_space<vmem>>, vector<1x1x8xf32>,
    return
  }
  func.func @transform_0(%arg0: i32) -> (i32, i32) {
    %c0_i32 = arith.constant 0 : i32
    %c0_i32_0 = arith.constant 0 : i32
    return %arg0, %c0_i32 : i32, i32
  }
  func.func @transform_1(%arg0: i32) -> (i32, i32) {
    %c0_i32 = arith.constant 0 : i32
    %c0_i32_0 = arith.constant 0 : i32
    %c0_i32_1 = arith.constant 0 : i32
    return %c0_i32, %c0_i32_0 : i32, i32
  }
  func.func @transform_2(%arg0: i32) -> (i32, i32) {
    %c0_i32 = arith.constant 0 : i32
    %c0_i32_0 = arith.constant 0 : i32
    %c0_i32_1 = arith.constant 0 : i32
    return %c0_i32, %c0_i32_0 : i32, i32
  }
  func.func @transform_3(%arg0: i32) -> (i32, i32) {
    %c0_i32 = arith.constant 0 : i32
    %c0_i32_0 = arith.constant 0 : i32
    %c0_i32_1 = arith.constant 0 : i32
    return %c0_i32, %c0_i32_0 : i32, i32
  }
  func.func @transform_4(%arg0: i32) -> (i32, i32) {
    %c0_i32 = arith.constant 0 : i32
    %c0_i32_0 = arith.constant 0 : i32
    %c0_i32_1 = arith.constant 0 : i32
    return %c0_i32, %c0_i32_0 : i32, i32
  }
  func.func @transform_5(%arg0: i32) -> (i32, i32) {
    %c0_i32 = arith.constant 0 : i32
    %c0_i32_0 = arith.constant 0 : i32
    %c0_i32_1 = arith.constant 0 : i32
    return %c0_i32, %c0_i32_0 : i32, i32
  }
  func.func @transform_6(%arg0: i32) -> (i32, i32) {
    %c0_i32 = arith.constant 0 : i32
    %c0_i32_0 = arith.constant 0 : i32
    %c0_i32_1 = arith.constant 0 : i32
    return %c0_i32, %c0_i32_0 : i32, i32
  }
  func.func @transform_7(%arg0: i32) -> (i32, i32, i32) {
    %c0_i32 = arith.constant 0 : i32
    %c0_i32_0 = arith.constant 0 : i32
    %c0_i32_1 = arith.constant 0 : i32
    return %arg0, %c0_i32, %c0_i32_0 : i32, i32, i32
  }
}

</mosaic_0001>

<llo_original>
// kernel: lers_recommendation_forward.1
$region0: #{lers_recommendation_forward.1}
  #allocation0 [shape = 'u32[]', space=smem, size = 0x4, offset = 0x4, fixed_abs, tag = 'smem constant byte address 0x4 - core index']
  #allocation1 [shape = 'u32[144,128]{1,0:T(1,128)}', space=vmem, size = 0x12000, scoped, tag = 'internal scratch']
  #allocation2 [shape = 'f32[1,1]{1,0:T(1,128)S(6)}', space=smem, size = 0x200, scoped, tag = 'scoped memory for lers_recommendation_forward.1']
  %s0 = inlined_call_operand.vmem [shape: f32[8,811], index: 0, kind: input, shape index: {}]
  %s1 = inlined_call_operand.hbm [shape: bf16[811,256], index: 1, kind: input, shape index: {}]
  %s2 = inlined_call_operand.vmem [shape: f32[1,256], index: 2, kind: input, shape index: {}]
  %s3 = inlined_call_operand.vmem [shape: bf16[256,64], index: 3, kind: input, shape index: {}]
  %s4 = inlined_call_operand.vmem [shape: f32[1,64], index: 4, kind: input, shape index: {}]
  %s5 = inlined_call_operand.vmem [shape: f32[1,64], index: 5, kind: input, shape index: {}]
  %s6 = inlined_call_operand.<no memory space> [shape: f32[1,1], index: 6, kind: input, shape index: {}]
  %s7 = inlined_call_operand.hbm [shape: f32[1,1,8], index: 7, kind: output, shape index: {}]
  %s8 = sld [smem:[#allocation0]]
  $region42: #{lers_recommendation_forward.1} parent=0
    _
  %s10 = ssub.s32 1, %s8
  %s11 = scalar_select 0, %s10, %s8
  %12 = sst [smem:[#allocation2]] %s6
  $region1: #{lers_recommendation_forward.1} parent=0
    #allocation3 [shape = 'u8[417792]{0}', space=vmem, size = 0x66000, scoped, tag = 'input window, operand 1, single buffered']
    #allocation4 [shape = 's32[1]{0}', space=sflag, size = 0x4, scoped, tag = 'scoped memory for lers_recommendation_forward.1']
    #allocation5 [shape = 's32[1]{0}', space=sflag, size = 0x4, scoped, tag = 'scoped memory for lers_recommendation_forward.1']
    #allocation6 [shape = 'u8[512]{0}', space=vmem, size = 0x400, scoped, tag = 'output window, operand 0, single buffered']
    %13 = vsyncpa [#allocation4], 0
    %14 = vsyncpa [#allocation5], 0
    // Predicated region
    $region2: #{lers_recommendation_forward.1} parent=1 // pred_check
      _
    $region3: #{lers_recommendation_forward.1} parent=1 // pred_check_branch
      %16 = sbr.rel (0) target = $region5
    $region4: #{lers_recommendation_forward.1} parent=1 // pred_region
      _
    $region5: #{lers_recommendation_forward.1} parent=1 // pred_fallthru
      _
    // Predicated region
    $region6: #{lers_recommendation_forward.1} parent=1 // pred_check
      _
    $region7: #{lers_recommendation_forward.1} parent=1 // pred_check_branch
      %18 = sbr.rel (0) target = $region9
    $region8: #{lers_recommendation_forward.1} parent=1 // pred_region
      %s20 = ssub.s32 13056, 13056
      %21 = vsyncadd [#allocation4], %s20
      %s22 = sshll.u32 [#allocation3], 4
      %s23 = int_to_ptr.vmem [resolvable:$true] %s22
      %28 = dma.hbm_to_vmem [thread:$0]  %s1, 13056, %s23, [#allocation4], 128, 128, 8
    $region9: #{lers_recommendation_forward.1} parent=1 // pred_fallthru
      _
    // Predicated region
    $region10: #{lers_recommendation_forward.1} parent=1 // pred_check
      _
    $region11: #{lers_recommendation_forward.1} parent=1 // pred_check_branch
      %30 = sbr.rel (0) target = $region13
    $region12: #{lers_recommendation_forward.1} parent=1 // pred_region
      _
    $region13: #{lers_recommendation_forward.1} parent=1 // pred_fallthru
      _
    // Predicated region
    $region14: #{lers_recommendation_forward.1} parent=1 // pred_check
      _
    $region15: #{lers_recommendation_forward.1} parent=1 // pred_check_branch
      %32 = sbr.rel (0) target = $region17
    $region16: #{lers_recommendation_forward.1} parent=1 // pred_region
      _
    $region17: #{lers_recommendation_forward.1} parent=1 // pred_fallthru
      _
    // Predicated region
    $region18: #{lers_recommendation_forward.1} parent=1 // pred_check
      _
    $region19: #{lers_recommendation_forward.1} parent=1 // pred_check_branch
      %34 = sbr.rel (0) target = $region21
    $region20: #{lers_recommendation_forward.1} parent=1 // pred_region
      _
    $region21: #{lers_recommendation_forward.1} parent=1 // pred_fallthru
      _
    // Predicated region
    $region22: #{lers_recommendation_forward.1} parent=1 // pred_check
      _
    $region23: #{lers_recommendation_forward.1} parent=1 // pred_check_branch
      %36 = sbr.rel (0) target = $region25
    $region24: #{lers_recommendation_forward.1} parent=1 // pred_region
      _
    $region25: #{lers_recommendation_forward.1} parent=1 // pred_fallthru
      _
    // Predicated region
    $region26: #{lers_recommendation_forward.1} parent=1 // pred_check
      _
    $region27: #{lers_recommendation_forward.1} parent=1 // pred_check_branch
      %38 = sbr.rel (0) target = $region29
    $region28: #{lers_recommendation_forward.1} parent=1 // pred_region
      _
    $region29: #{lers_recommendation_forward.1} parent=1 // pred_fallthru
      _
    // Predicated region
    $region30: #{lers_recommendation_forward.1} parent=1 // pred_check
      _
    $region31: #{lers_recommendation_forward.1} parent=1 // pred_check_branch
      %40 = sbr.rel (0) target = $region33
    $region32: #{lers_recommendation_forward.1} parent=1 // pred_region
      %41 = dma.done [#allocation4], 13056
    $region33: #{lers_recommendation_forward.1} parent=1 // pred_fallthru
      _
    %v43 = vld [vmem:[%s0] sm:$0xff]
    %v44 = vld [vmem:[%s0 + $0x8] sm:$0xff]
    %v45 = vld [vmem:[%s0 + $0x10] sm:$0xff]
    %v46 = vld [vmem:[%s0 + $0x18] sm:$0xff]
    %v47 = vld [vmem:[%s0 + $0x20] sm:$0xff]
    %v48 = vld [vmem:[%s0 + $0x28] sm:$0xff]
    %v49 = vld [vmem:[%s0 + $0x30] sm:$0xff]
    %v50 = vpack.c.bf16 %v43, %v43
    %v51 = vpack.c.bf16 %v44, %v44
    %v52 = vpack.c.bf16 %v45, %v45
    %v53 = vpack.c.bf16 %v46, %v46
    %v54 = vpack.c.bf16 %v47, %v47
    %v55 = vpack.c.bf16 %v48, %v48
    %v56 = vpack.c.bf16 %v49, %v49
    %v57 = vld [vmem:[#allocation3] sm:$0xff]
    %v58 = vld [vmem:[#allocation3 + $0x8] sm:$0xff]
    %v59 = vld [vmem:[#allocation3 + $0x10] sm:$0xff]
    %v60 = vld [vmem:[#allocation3 + $0x18] sm:$0xff]
    %v61 = vld [vmem:[#allocation3 + $0x20] sm:$0xff]
    %v62 = vld [vmem:[#allocation3 + $0x28] sm:$0xff]
    %v63 = vld [vmem:[#allocation3 + $0x30] sm:$0xff]
    %v64 = vld [vmem:[#allocation3 + $0x38] sm:$0xff]
    %v65 = vld [vmem:[#allocation3 + $0x40] sm:$0xff]
    %v66 = vld [vmem:[#allocation3 + $0x48] sm:$0xff]
    %v67 = vld [vmem:[#allocation3 + $0x50] sm:$0xff]
    %v68 = vld [vmem:[#allocation3 + $0x58] sm:$0xff]
    %v69 = vld [vmem:[#allocation3 + $0x60] sm:$0xff]
    %v70 = vld [vmem:[#allocation3 + $0x68] sm:$0xff]
    %v71 = vld [vmem:[#allocation3 + $0x70] sm:$0xff]
    %v72 = vld [vmem:[#allocation3 + $0x78] sm:$0xff]
    %v73 = vld [vmem:[#allocation3 + $0x80] sm:$0xff]
    %v74 = vld [vmem:[#allocation3 + $0x88] sm:$0xff]
    %v75 = vld [vmem:[#allocation3 + $0x90] sm:$0xff]
    %v76 = vld [vmem:[#allocation3 + $0x98] sm:$0xff]
    %v77 = vld [vmem:[#allocation3 + $0xa0] sm:$0xff]
    %v78 = vld [vmem:[#allocation3 + $0xa8] sm:$0xff]
    %v79 = vld [vmem:[#allocation3 + $0xb0] sm:$0xff]
    %v80 = vld [vmem:[#allocation3 + $0xb8] sm:$0xff]
    %v81 = vld [vmem:[#allocation3 + $0xc0] sm:$0xff]
    %v82 = vld [vmem:[#allocation3 + $0xc8] sm:$0xff]
    %v83 = vld [vmem:[#allocation3 + $0xd0] sm:$0xff]
    %v84 = vld [vmem:[#allocation3 + $0xd8] sm:$0xff]
    %v85 = vld [vmem:[#allocation3 + $0xe0] sm:$0xff]
    %v86 = vld [vmem:[#allocation3 + $0xe8] sm:$0xff]
    %v87 = vld [vmem:[#allocation3 + $0xf0] sm:$0xff]
    %v88 = vld [vmem:[#allocation3 + $0xf8] sm:$0xff]
    %v89 = vld [vmem:[#allocation3 + $0x100] sm:$0xff]
    %v90 = vld [vmem:[#allocation3 + $0x108] sm:$0xff]
    %v91 = vld [vmem:[#allocation3 + $0x110] sm:$0xff]
    %v92 = vld [vmem:[#allocation3 + $0x118] sm:$0xff]
    %v93 = vld [vmem:[#allocation3 + $0x120] sm:$0xff]
    %v94 = vld [vmem:[#allocation3 + $0x128] sm:$0xff]
    %v95 = vld [vmem:[#allocation3 + $0x130] sm:$0xff]
    %v96 = vld [vmem:[#allocation3 + $0x138] sm:$0xff]
    %v97 = vld [vmem:[#allocation3 + $0x140] sm:$0xff]
    %v98 = vld [vmem:[#allocation3 + $0x148] sm:$0xff]
    %v99 = vld [vmem:[#allocation3 + $0x150] sm:$0xff]
    %v100 = vld [vmem:[#allocation3 + $0x158] sm:$0xff]
    %v101 = vld [vmem:[#allocation3 + $0x160] sm:$0xff]
    %v102 = vld [vmem:[#allocation3 + $0x168] sm:$0xff]
    %v103 = vld [vmem:[#allocation3 + $0x170] sm:$0xff]
    %v104 = vld [vmem:[#allocation3 + $0x178] sm:$0xff]
    %v105 = vld [vmem:[#allocation3 + $0x180] sm:$0xff]
    %v106 = vld [vmem:[#allocation3 + $0x188] sm:$0xff]
    %v107 = vld [vmem:[#allocation3 + $0x190] sm:$0xff]
    %v108 = vld [vmem:[#allocation3 + $0x198] sm:$0xff]
    %v109 = vld [vmem:[#allocation3 + $0x1a0] sm:$0xff]
    %v110 = vld [vmem:[#allocation3 + $0x1a8] sm:$0xff]
    %v111 = vld [vmem:[#allocation3 + $0x1b0] sm:$0xff]
    %v112 = vld [vmem:[#allocation3 + $0x1b8] sm:$0xff]
    %v113 = vld [vmem:[#allocation3 + $0x1c0] sm:$0xff]
    %v114 = vld [vmem:[#allocation3 + $0x1c8] sm:$0xff]
    %v115 = vld [vmem:[#allocation3 + $0x1d0] sm:$0xff]
    %v116 = vld [vmem:[#allocation3 + $0x1d8] sm:$0xff]
    %v117 = vld [vmem:[#allocation3 + $0x1e0] sm:$0xff]
    %v118 = vld [vmem:[#allocation3 + $0x1e8] sm:$0xff]
    %v119 = vld [vmem:[#allocation3 + $0x1f0] sm:$0xff]
    %v120 = vld [vmem:[#allocation3 + $0x1f8] sm:$0xff]
    %v121 = vld [vmem:[#allocation3 + $0x200] sm:$0xff]
    %v122 = vld [vmem:[#allocation3 + $0x208] sm:$0xff]
    %v123 = vld [vmem:[#allocation3 + $0x210] sm:$0xff]
    %v124 = vld [vmem:[#allocation3 + $0x218] sm:$0xff]
    %v125 = vld [vmem:[#allocation3 + $0x220] sm:$0xff]
    %v126 = vld [vmem:[#allocation3 + $0x228] sm:$0xff]
    %v127 = vld [vmem:[#allocation3 + $0x230] sm:$0xff]
    %v128 = vld [vmem:[#allocation3 + $0x238] sm:$0xff]
    %v129 = vld [vmem:[#allocation3 + $0x240] sm:$0xff]
    %v130 = vld [vmem:[#allocation3 + $0x248] sm:$0xff]
    %v131 = vld [vmem:[#allocation3 + $0x250] sm:$0xff]
    %v132 = vld [vmem:[#allocation3 + $0x258] sm:$0xff]
    %v133 = vld [vmem:[#allocation3 + $0x260] sm:$0xff]
    %v134 = vld [vmem:[#allocation3 + $0x268] sm:$0xff]
    %v135 = vld [vmem:[#allocation3 + $0x270] sm:$0xff]
    %v136 = vld [vmem:[#allocation3 + $0x278] sm:$0xff]
    %v137 = vld [vmem:[#allocation3 + $0x280] sm:$0xff]
    %v138 = vld [vmem:[#allocation3 + $0x288] sm:$0xff]
    %v139 = vld [vmem:[#allocation3 + $0x290] sm:$0xff]
    %v140 = vld [vmem:[#allocation3 + $0x298] sm:$0xff]
    %v141 = vld [vmem:[#allocation3 + $0x2a0] sm:$0xff]
    %v142 = vld [vmem:[#allocation3 + $0x2a8] sm:$0xff]
    %v143 = vld [vmem:[#allocation3 + $0x2b0] sm:$0xff]
    %v144 = vld [vmem:[#allocation3 + $0x2b8] sm:$0xff]
    %v145 = vld [vmem:[#allocation3 + $0x2c0] sm:$0xff]
    %v146 = vld [vmem:[#allocation3 + $0x2c8] sm:$0xff]
    %v147 = vld [vmem:[#allocation3 + $0x2d0] sm:$0xff]
    %v148 = vld [vmem:[#allocation3 + $0x2d8] sm:$0xff]
    %v149 = vld [vmem:[#allocation3 + $0x2e0] sm:$0xff]
    %v150 = vld [vmem:[#allocation3 + $0x2e8] sm:$0xff]
    %v151 = vld [vmem:[#allocation3 + $0x2f0] sm:$0xff]
    %v152 = vld [vmem:[#allocation3 + $0x2f8] sm:$0xff]
    %v153 = vld [vmem:[#allocation3 + $0x300] sm:$0xff]
    %v154 = vld [vmem:[#allocation3 + $0x308] sm:$0xff]
    %v155 = vld [vmem:[#allocation3 + $0x310] sm:$0xff]
    %v156 = vld [vmem:[#allocation3 + $0x318] sm:$0xff]
    %v157 = vld [vmem:[#allocation3 + $0x320] sm:$0xff]
    %v158 = vld [vmem:[#allocation3 + $0x328] sm:$0x33]
    %v159 = vld [vmem:[%s2] sm:$0x3]
    %v161 = vlaneseq
    %v162 = vshrl.u32 %v161, 7
    %v163 = vsub.s32 0, %v162
    %v164 = vrot.slane %v159, %v163
    %v165 = vlaneseq
    %v166 = vshrl.u32 %v165, 7
    %v167 = vsub.s32 1, %v166
    %v168 = vrot.slane %v159, %v167
    %v273 = vunpack.c.l.b16 %v57
    %v274 = vunpack.c.h.b16 %v57
    %v275 = vunpack.c.l.b16 %v58
    %v276 = vunpack.c.h.b16 %v58
    %v277 = vunpack.c.l.b16 %v59
    %v278 = vunpack.c.h.b16 %v59
    %v279 = vunpack.c.l.b16 %v60
    %v280 = vunpack.c.h.b16 %v60
    %v281 = vunpack.c.l.b16 %v61
    %v282 = vunpack.c.h.b16 %v61
    %v283 = vunpack.c.l.b16 %v62
    %v284 = vunpack.c.h.b16 %v62
    %v285 = vunpack.c.l.b16 %v63
    %v286 = vunpack.c.h.b16 %v63
    %v287 = vunpack.c.l.b16 %v64
    %v288 = vunpack.c.h.b16 %v64
    %v289 = vunpack.c.l.b16 %v65
    %v290 = vunpack.c.h.b16 %v65
    %v291 = vunpack.c.l.b16 %v66
    %v292 = vunpack.c.h.b16 %v66
    %v293 = vunpack.c.l.b16 %v67
    %v294 = vunpack.c.h.b16 %v67
    %v295 = vunpack.c.l.b16 %v68
    %v296 = vunpack.c.h.b16 %v68
    %v297 = vunpack.c.l.b16 %v69
    %v298 = vunpack.c.h.b16 %v69
    %v299 = vunpack.c.l.b16 %v70
    %v300 = vunpack.c.h.b16 %v70
    %v301 = vunpack.c.l.b16 %v71
    %v302 = vunpack.c.h.b16 %v71
    %v303 = vunpack.c.l.b16 %v72
    %v304 = vunpack.c.h.b16 %v72
    %v305 = vunpack.c.l.b16 %v73
    %v306 = vunpack.c.h.b16 %v73
    %v307 = vunpack.c.l.b16 %v74
    %v308 = vunpack.c.h.b16 %v74
    %v309 = vunpack.c.l.b16 %v75
    %v310 = vunpack.c.h.b16 %v75
    %v311 = vunpack.c.l.b16 %v76
    %v312 = vunpack.c.h.b16 %v76
    %v313 = vunpack.c.l.b16 %v77
    %v314 = vunpack.c.h.b16 %v77
    %v315 = vunpack.c.l.b16 %v78
    %v316 = vunpack.c.h.b16 %v78
    %v317 = vunpack.c.l.b16 %v79
    %v318 = vunpack.c.h.b16 %v79
    %v319 = vunpack.c.l.b16 %v80
    %v320 = vunpack.c.h.b16 %v80
    %v321 = vunpack.c.l.b16 %v81
    %v322 = vunpack.c.h.b16 %v81
    %v323 = vunpack.c.l.b16 %v82
    %v324 = vunpack.c.h.b16 %v82
    %v325 = vunpack.c.l.b16 %v83
    %v326 = vunpack.c.h.b16 %v83
    %v327 = vunpack.c.l.b16 %v84
    %v328 = vunpack.c.h.b16 %v84
    %v329 = vunpack.c.l.b16 %v85
    %v330 = vunpack.c.h.b16 %v85
    %v331 = vunpack.c.l.b16 %v86
    %v332 = vunpack.c.h.b16 %v86
    %v333 = vunpack.c.l.b16 %v87
    %v334 = vunpack.c.h.b16 %v87
    %v335 = vunpack.c.l.b16 %v88
    %v336 = vunpack.c.h.b16 %v88
    %v337 = vunpack.c.l.b16 %v89
    %v338 = vunpack.c.h.b16 %v89
    %v339 = vunpack.c.l.b16 %v90
    %v340 = vunpack.c.h.b16 %v90
    %v341 = vunpack.c.l.b16 %v91
    %v342 = vunpack.c.h.b16 %v91
    %v343 = vunpack.c.l.b16 %v92
    %v344 = vunpack.c.h.b16 %v92
    %v345 = vunpack.c.l.b16 %v93
    %v346 = vunpack.c.h.b16 %v93
    %v347 = vunpack.c.l.b16 %v94
    %v348 = vunpack.c.h.b16 %v94
    %v349 = vunpack.c.l.b16 %v95
    %v350 = vunpack.c.h.b16 %v95
    %v351 = vunpack.c.l.b16 %v96
    %v352 = vunpack.c.h.b16 %v96
    %v353 = vunpack.c.l.b16 %v97
    %v354 = vunpack.c.h.b16 %v97
    %v355 = vunpack.c.l.b16 %v98
    %v356 = vunpack.c.h.b16 %v98
    %v357 = vunpack.c.l.b16 %v99
    %v358 = vunpack.c.h.b16 %v99
    %v359 = vunpack.c.l.b16 %v100
    %v360 = vunpack.c.h.b16 %v100
    %v361 = vunpack.c.l.b16 %v101
    %v362 = vunpack.c.h.b16 %v101
    %v363 = vunpack.c.l.b16 %v102
    %v364 = vunpack.c.h.b16 %v102
    %v365 = vunpack.c.l.b16 %v103
    %v366 = vunpack.c.h.b16 %v103
    %v367 = vunpack.c.l.b16 %v104
    %v368 = vunpack.c.h.b16 %v104
    %v369 = vunpack.c.l.b16 %v105
    %v370 = vunpack.c.h.b16 %v105
    %v371 = vunpack.c.l.b16 %v106
    %v372 = vunpack.c.h.b16 %v106
    %v373 = vunpack.c.l.b16 %v107
    %v374 = vunpack.c.h.b16 %v107
    %v375 = vunpack.c.l.b16 %v108
    %v376 = vunpack.c.h.b16 %v108
    %v377 = vunpack.c.l.b16 %v109
    %v378 = vunpack.c.h.b16 %v109
    %v379 = vunpack.c.l.b16 %v110
    %v380 = vunpack.c.h.b16 %v110
    %v381 = vunpack.c.l.b16 %v111
    %v382 = vunpack.c.h.b16 %v111
    %v383 = vunpack.c.l.b16 %v112
    %v384 = vunpack.c.h.b16 %v112
    %v385 = vunpack.c.l.b16 %v113
    %v386 = vunpack.c.h.b16 %v113
    %v387 = vunpack.c.l.b16 %v114
    %v388 = vunpack.c.h.b16 %v114
    %v389 = vunpack.c.l.b16 %v115
    %v390 = vunpack.c.h.b16 %v115
    %v391 = vunpack.c.l.b16 %v116
    %v392 = vunpack.c.h.b16 %v116
    %v393 = vunpack.c.l.b16 %v117
    %v394 = vunpack.c.h.b16 %v117
    %v395 = vunpack.c.l.b16 %v118
    %v396 = vunpack.c.h.b16 %v118
    %v397 = vunpack.c.l.b16 %v119
    %v398 = vunpack.c.h.b16 %v119
    %v399 = vunpack.c.l.b16 %v120
    %v400 = vunpack.c.h.b16 %v120
    %v401 = vunpack.c.l.b16 %v121
    %v402 = vunpack.c.h.b16 %v121
    %v403 = vunpack.c.l.b16 %v122
    %v404 = vunpack.c.h.b16 %v122
    %v405 = vunpack.c.l.b16 %v123
    %v406 = vunpack.c.h.b16 %v123
    %v407 = vunpack.c.l.b16 %v124
    %v408 = vunpack.c.h.b16 %v124
    %v409 = vunpack.c.l.b16 %v125
    %v410 = vunpack.c.h.b16 %v125
    %v411 = vunpack.c.l.b16 %v126
    %v412 = vunpack.c.h.b16 %v126
    %v413 = vunpack.c.l.b16 %v127
    %v414 = vunpack.c.h.b16 %v127
    %v415 = vunpack.c.l.b16 %v128
    %v416 = vunpack.c.h.b16 %v128
    %v417 = vunpack.c.l.b16 %v129
    %v418 = vunpack.c.h.b16 %v129
    %v419 = vunpack.c.l.b16 %v130
    %v420 = vunpack.c.h.b16 %v130
    %v421 = vunpack.c.l.b16 %v131
    %v422 = vunpack.c.h.b16 %v131
    %v423 = vunpack.c.l.b16 %v132
    %v424 = vunpack.c.h.b16 %v132
    %v425 = vunpack.c.l.b16 %v133
    %v426 = vunpack.c.h.b16 %v133
    %v427 = vunpack.c.l.b16 %v134
    %v428 = vunpack.c.h.b16 %v134
    %v429 = vunpack.c.l.b16 %v135
    %v430 = vunpack.c.h.b16 %v135
    %v431 = vunpack.c.l.b16 %v136
    %v432 = vunpack.c.h.b16 %v136
    %v433 = vunpack.c.l.b16 %v137
    %v434 = vunpack.c.h.b16 %v137
    %v435 = vunpack.c.l.b16 %v138
    %v436 = vunpack.c.h.b16 %v138
    %v437 = vunpack.c.l.b16 %v139
    %v438 = vunpack.c.h.b16 %v139
    %v439 = vunpack.c.l.b16 %v140
    %v440 = vunpack.c.h.b16 %v140
    %v441 = vunpack.c.l.b16 %v141
    %v442 = vunpack.c.h.b16 %v141
    %v443 = vunpack.c.l.b16 %v142
    %v444 = vunpack.c.h.b16 %v142
    %v445 = vunpack.c.l.b16 %v143
    %v446 = vunpack.c.h.b16 %v143
    %v447 = vunpack.c.l.b16 %v144
    %v448 = vunpack.c.h.b16 %v144
    %v449 = vunpack.c.l.b16 %v145
    %v450 = vunpack.c.h.b16 %v145
    %v451 = vunpack.c.l.b16 %v146
    %v452 = vunpack.c.h.b16 %v146
    %v453 = vunpack.c.l.b16 %v147
    %v454 = vunpack.c.h.b16 %v147
    %v455 = vunpack.c.l.b16 %v148
    %v456 = vunpack.c.h.b16 %v148
    %v457 = vunpack.c.l.b16 %v149
    %v458 = vunpack.c.h.b16 %v149
    %v459 = vunpack.c.l.b16 %v150
    %v460 = vunpack.c.h.b16 %v150
    %v461 = vunpack.c.l.b16 %v151
    %v462 = vunpack.c.h.b16 %v151
    %v463 = vunpack.c.l.b16 %v152
    %v464 = vunpack.c.h.b16 %v152
    %v465 = vunpack.c.l.b16 %v153
    %v466 = vunpack.c.h.b16 %v153
    %v467 = vunpack.c.l.b16 %v154
    %v468 = vunpack.c.h.b16 %v154
    %v469 = vunpack.c.l.b16 %v155
    %v470 = vunpack.c.h.b16 %v155
    %v471 = vunpack.c.l.b16 %v156
    %v472 = vunpack.c.h.b16 %v156
    %v473 = vunpack.c.l.b16 %v157
    %v474 = vunpack.c.h.b16 %v157
    %v475 = vunpack.c.l.b16 %v158
    %v476 = vunpack.c.h.b16 %v158
    %v477 = vpack.c.b16 %v275, %v273
    %v478 = vpack.c.b16 %v276, %v274
    %v479 = vpack.c.b16 %v279, %v277
    %v480 = vpack.c.b16 %v280, %v278
    %v481 = vpack.c.b16 %v283, %v281
    %v482 = vpack.c.b16 %v284, %v282
    %v483 = vpack.c.b16 %v287, %v285
    %v484 = vpack.c.b16 %v288, %v286
    %v485 = vpack.c.b16 %v291, %v289
    %v486 = vpack.c.b16 %v292, %v290
    %v487 = vpack.c.b16 %v295, %v293
    %v488 = vpack.c.b16 %v296, %v294
    %v489 = vpack.c.b16 %v299, %v297
    %v490 = vpack.c.b16 %v300, %v298
    %v491 = vpack.c.b16 %v303, %v301
    %v492 = vpack.c.b16 %v304, %v302
    %v493 = vpack.c.b16 %v307, %v305
    %v494 = vpack.c.b16 %v308, %v306
    %v495 = vpack.c.b16 %v311, %v309
    %v496 = vpack.c.b16 %v312, %v310
    %v497 = vpack.c.b16 %v315, %v313
    %v498 = vpack.c.b16 %v316, %v314
    %v499 = vpack.c.b16 %v319, %v317
    %v500 = vpack.c.b16 %v320, %v318
    %v501 = vpack.c.b16 %v323, %v321
    %v502 = vpack.c.b16 %v324, %v322
    %v503 = vpack.c.b16 %v327, %v325
    %v504 = vpack.c.b16 %v328, %v326
    %v505 = vpack.c.b16 %v331, %v329
    %v506 = vpack.c.b16 %v332, %v330
    %v507 = vpack.c.b16 %v335, %v333
    %v508 = vpack.c.b16 %v336, %v334
    %v509 = vpack.c.b16 %v339, %v337
    %v510 = vpack.c.b16 %v340, %v338
    %v511 = vpack.c.b16 %v343, %v341
    %v512 = vpack.c.b16 %v344, %v342
    %v513 = vpack.c.b16 %v347, %v345
    %v514 = vpack.c.b16 %v348, %v346
    %v515 = vpack.c.b16 %v351, %v349
    %v516 = vpack.c.b16 %v352, %v350
    %v517 = vpack.c.b16 %v355, %v353
    %v518 = vpack.c.b16 %v356, %v354
    %v519 = vpack.c.b16 %v359, %v357
    %v520 = vpack.c.b16 %v360, %v358
    %v521 = vpack.c.b16 %v363, %v361
    %v522 = vpack.c.b16 %v364, %v362
    %v523 = vpack.c.b16 %v367, %v365
    %v524 = vpack.c.b16 %v368, %v366
    %v525 = vpack.c.b16 %v371, %v369
    %v526 = vpack.c.b16 %v372, %v370
    %v527 = vpack.c.b16 %v375, %v373
    %v528 = vpack.c.b16 %v376, %v374
    %v529 = vpack.c.b16 %v379, %v377
    %v530 = vpack.c.b16 %v380, %v378
    %v531 = vpack.c.b16 %v383, %v381
    %v532 = vpack.c.b16 %v384, %v382
    %v533 = vpack.c.b16 %v387, %v385
    %v534 = vpack.c.b16 %v388, %v386
    %v535 = vpack.c.b16 %v391, %v389
    %v536 = vpack.c.b16 %v392, %v390
    %v537 = vpack.c.b16 %v395, %v393
    %v538 = vpack.c.b16 %v396, %v394
    %v539 = vpack.c.b16 %v399, %v397
    %v540 = vpack.c.b16 %v400, %v398
    %v541 = vpack.c.b16 %v403, %v401
    %v542 = vpack.c.b16 %v404, %v402
    %v543 = vpack.c.b16 %v407, %v405
    %v544 = vpack.c.b16 %v408, %v406
    %v545 = vpack.c.b16 %v411, %v409
    %v546 = vpack.c.b16 %v412, %v410
    %v547 = vpack.c.b16 %v415, %v413
    %v548 = vpack.c.b16 %v416, %v414
    %v549 = vpack.c.b16 %v419, %v417
    %v550 = vpack.c.b16 %v420, %v418
    %v551 = vpack.c.b16 %v423, %v421
    %v552 = vpack.c.b16 %v424, %v422
    %v553 = vpack.c.b16 %v427, %v425
    %v554 = vpack.c.b16 %v428, %v426
    %v555 = vpack.c.b16 %v431, %v429
    %v556 = vpack.c.b16 %v432, %v430
    %v557 = vpack.c.b16 %v435, %v433
    %v558 = vpack.c.b16 %v436, %v434
    %v559 = vpack.c.b16 %v439, %v437
    %v560 = vpack.c.b16 %v440, %v438
    %v561 = vpack.c.b16 %v443, %v441
    %v562 = vpack.c.b16 %v444, %v442
    %v563 = vpack.c.b16 %v447, %v445
    %v564 = vpack.c.b16 %v448, %v446
    %v565 = vpack.c.b16 %v451, %v449
    %v566 = vpack.c.b16 %v452, %v450
    %v567 = vpack.c.b16 %v455, %v453
    %v568 = vpack.c.b16 %v456, %v454
    %v569 = vpack.c.b16 %v459, %v457
    %v570 = vpack.c.b16 %v460, %v458
    %v571 = vpack.c.b16 %v463, %v461
    %v572 = vpack.c.b16 %v464, %v462
    %v573 = vpack.c.b16 %v467, %v465
    %v574 = vpack.c.b16 %v468, %v466
    %v575 = vpack.c.b16 %v471, %v469
    %v576 = vpack.c.b16 %v472, %v470
    %v577 = vpack.c.b16 %v475, %v473
    %v578 = vpack.c.b16 %v476, %v474
    %vm679 = vcmask 351232
    %v681 = vsel %vm679, %v56, 0
    %vm683 = vcmask 1044480
    %vm684 = vcmask 1045504
    %v685 = vsel %vm683, 4294967295, 65535
    %v686 = vsel %vm684, %v685, 0
    %v688 = vand.u32 %v577, %v686
    %v691 = vand.u32 %v578, %v686
    %693 = vmatprep.subr.bf16.mxu0 %v492
    %694 = vmatpush1.bf16.msra.mxu0 %v491
    %695 = vmatprep.subr.bf16.mxu0 %v490
    %696 = vmatpush1.bf16.msra.mxu0 %v489
    %697 = vmatprep.subr.bf16.mxu0 %v488
    %698 = vmatpush1.bf16.msra.mxu0 %v487
    %699 = vmatprep.subr.bf16.mxu0 %v486
    %700 = vmatpush1.bf16.msra.mxu0 %v485
    %701 = vmatprep.subr.bf16.mxu0 %v484
    %702 = vmatpush1.bf16.msra.mxu0 %v483
    %703 = vmatprep.subr.bf16.mxu0 %v482
    %704 = vmatpush1.bf16.msra.mxu0 %v481
    %705 = vmatprep.subr.bf16.mxu0 %v480
    %706 = vmatpush1.bf16.msra.mxu0 %v479
    %707 = vmatprep.subr.bf16.mxu0 %v478
    %708 = vmatpush1.bf16.msra.mxu0 %v477
    %709 = vmatprep.subr.bf16.mxu0 %v508
    %710 = vmatpush2.bf16.msra.mxu0 %v507
    %711 = vmatprep.subr.bf16.mxu0 %v506
    %712 = vmatpush2.bf16.msra.mxu0 %v505
    %713 = vmatprep.subr.bf16.mxu0 %v504
    %714 = vmatpush2.bf16.msra.mxu0 %v503
    %715 = vmatprep.subr.bf16.mxu0 %v502
    %716 = vmatpush2.bf16.msra.mxu0 %v501
    %717 = vmatprep.subr.bf16.mxu0 %v500
    %718 = vmatpush2.bf16.msra.mxu0 %v499
    %719 = vmatprep.subr.bf16.mxu0 %v498
    %720 = vmatpush2.bf16.msra.mxu0 %v497
    %721 = vmatprep.subr.bf16.mxu0 %v496
    %722 = vmatpush2.bf16.msra.mxu0 %v495
    %723 = vmatprep.subr.bf16.mxu0 %v494
    %724 = vmatpush2.bf16.msra.mxu0 %v493
    %725 = vmatprep.mubr.bf16.mxu0 %v51
    %726 = vmatmul.mubr.bf16.gmra.mxu0 %v50
    %v727 = vpop.f32.mrf.mxu0
    %v728 = vadd.f32 %v164, %v727
    %v729 = vpop.f32.mrf.mxu0
    %v730 = vadd.f32 %v168, %v729
    %v731 = vpop.f32.mrf.mxu0
    %v732 = vpop.f32.mrf.mxu0
    %733 = vdwg.mxu0
    %734 = vmatprep.subr.bf16.mxu0 %v524
    %735 = vmatpush1.bf16.msra.mxu0 %v523
    %736 = vmatprep.subr.bf16.mxu0 %v522
    %737 = vmatpush1.bf16.msra.mxu0 %v521
    %738 = vmatprep.subr.bf16.mxu0 %v520
    %739 = vmatpush1.bf16.msra.mxu0 %v519
    %740 = vmatprep.subr.bf16.mxu0 %v518
    %741 = vmatpush1.bf16.msra.mxu0 %v517
    %742 = vmatprep.subr.bf16.mxu0 %v516
    %743 = vmatpush1.bf16.msra.mxu0 %v515
    %744 = vmatprep.subr.bf16.mxu0 %v514
    %745 = vmatpush1.bf16.msra.mxu0 %v513
    %746 = vmatprep.subr.bf16.mxu0 %v512
    %747 = vmatpush1.bf16.msra.mxu0 %v511
    %748 = vmatprep.subr.bf16.mxu0 %v510
    %749 = vmatpush1.bf16.msra.mxu0 %v509
    %750 = vmatprep.subr.bf16.mxu0 %v540
    %751 = vmatpush2.bf16.msra.mxu0 %v539
    %752 = vmatprep.subr.bf16.mxu0 %v538
    %753 = vmatpush2.bf16.msra.mxu0 %v537
    %754 = vmatprep.subr.bf16.mxu0 %v536
    %755 = vmatpush2.bf16.msra.mxu0 %v535
    %756 = vmatprep.subr.bf16.mxu0 %v534
    %757 = vmatpush2.bf16.msra.mxu0 %v533
    %758 = vmatprep.subr.bf16.mxu0 %v532
    %759 = vmatpush2.bf16.msra.mxu0 %v531
    %760 = vmatprep.subr.bf16.mxu0 %v530
    %761 = vmatpush2.bf16.msra.mxu0 %v529
    %762 = vmatprep.subr.bf16.mxu0 %v528
    %763 = vmatpush2.bf16.msra.mxu0 %v527
    %764 = vmatprep.subr.bf16.mxu0 %v526
    %765 = vmatpush2.bf16.msra.mxu0 %v525
    %766 = vmatprep.mubr.bf16.mxu0 %v53
    %767 = vmatmul.mubr.bf16.gmra.mxu0 %v52
    %v768 = vpop.f32.mrf.mxu0
    %v769 = vadd.f32 %v728, %v768
    %v770 = vpop.f32.mrf.mxu0
    %v771 = vadd.f32 %v730, %v770
    %v772 = vpop.f32.mrf.mxu0
    %v773 = vpop.f32.mrf.mxu0
    %774 = vdwg.mxu0
    %775 = vmatprep.subr.bf16.mxu0 %v556
    %776 = vmatpush1.bf16.msra.mxu0 %v555
    %777 = vmatprep.subr.bf16.mxu0 %v554
    %778 = vmatpush1.bf16.msra.mxu0 %v553
    %779 = vmatprep.subr.bf16.mxu0 %v552
    %780 = vmatpush1.bf16.msra.mxu0 %v551
    %781 = vmatprep.subr.bf16.mxu0 %v550
    %782 = vmatpush1.bf16.msra.mxu0 %v549
    %783 = vmatprep.subr.bf16.mxu0 %v548
    %784 = vmatpush1.bf16.msra.mxu0 %v547
    %785 = vmatprep.subr.bf16.mxu0 %v546
    %786 = vmatpush1.bf16.msra.mxu0 %v545
    %787 = vmatprep.subr.bf16.mxu0 %v544
    %788 = vmatpush1.bf16.msra.mxu0 %v543
    %789 = vmatprep.subr.bf16.mxu0 %v542
    %790 = vmatpush1.bf16.msra.mxu0 %v541
    %791 = vmatprep.subr.bf16.mxu0 %v572
    %792 = vmatpush2.bf16.msra.mxu0 %v571
    %793 = vmatprep.subr.bf16.mxu0 %v570
    %794 = vmatpush2.bf16.msra.mxu0 %v569
    %795 = vmatprep.subr.bf16.mxu0 %v568
    %796 = vmatpush2.bf16.msra.mxu0 %v567
    %797 = vmatprep.subr.bf16.mxu0 %v566
    %798 = vmatpush2.bf16.msra.mxu0 %v565
    %799 = vmatprep.subr.bf16.mxu0 %v564
    %800 = vmatpush2.bf16.msra.mxu0 %v563
    %801 = vmatprep.subr.bf16.mxu0 %v562
    %802 = vmatpush2.bf16.msra.mxu0 %v561
    %803 = vmatprep.subr.bf16.mxu0 %v560
    %804 = vmatpush2.bf16.msra.mxu0 %v559
    %805 = vmatprep.subr.bf16.mxu0 %v558
    %806 = vmatpush2.bf16.msra.mxu0 %v557
    %807 = vmatprep.mubr.bf16.mxu0 %v55
    %808 = vmatmul.mubr.bf16.gmra.mxu0 %v54
    %v809 = vpop.f32.mrf.mxu0
    %v810 = vadd.f32 %v769, %v809
    %v811 = vpop.f32.mrf.mxu0
    %v812 = vadd.f32 %v771, %v811
    %v813 = vpop.f32.mrf.mxu0
    %v814 = vpop.f32.mrf.mxu0
    %815 = vdwg.mxu0
    %816 = vmatprep.subr.bf16.mxu0 0
    %817 = vmatpush1.bf16.msra.mxu0 0
    %818 = vmatprep.subr.bf16.mxu0 0
    %819 = vmatpush1.bf16.msra.mxu0 0
    %820 = vmatprep.subr.bf16.mxu0 0
    %821 = vmatpush1.bf16.msra.mxu0 0
    %822 = vmatprep.subr.bf16.mxu0 0
    %823 = vmatpush1.bf16.msra.mxu0 0
    %824 = vmatprep.subr.bf16.mxu0 0
    %825 = vmatpush1.bf16.msra.mxu0 0
    %826 = vmatprep.subr.bf16.mxu0 %v691
    %827 = vmatpush1.bf16.msra.mxu0 %v688
    %828 = vmatprep.subr.bf16.mxu0 %v576
    %829 = vmatpush1.bf16.msra.mxu0 %v575
    %830 = vmatprep.subr.bf16.mxu0 %v574
    %831 = vmatpush1.bf16.msra.mxu0 %v573
    %832 = vmatprep.subr.bf16.mxu0 0
    %833 = vmatpush2.bf16.msra.mxu0 0
    %834 = vmatprep.subr.bf16.mxu0 0
    %835 = vmatpush2.bf16.msra.mxu0 0
    %836 = vmatprep.subr.bf16.mxu0 0
    %837 = vmatpush2.bf16.msra.mxu0 0
    %838 = vmatprep.subr.bf16.mxu0 0
    %839 = vmatpush2.bf16.msra.mxu0 0
    %840 = vmatprep.subr.bf16.mxu0 0
    %841 = vmatpush2.bf16.msra.mxu0 0
    %842 = vmatprep.subr.bf16.mxu0 0
    %843 = vmatpush2.bf16.msra.mxu0 0
    %844 = vmatprep.subr.bf16.mxu0 0
    %845 = vmatpush2.bf16.msra.mxu0 0
    %846 = vmatprep.subr.bf16.mxu0 0
    %847 = vmatpush2.bf16.msra.mxu0 0
    %848 = vmatprep.mubr.bf16.mxu0 0
    %849 = vmatmul.mubr.bf16.gmra.mxu0 %v681
    %v850 = vpop.f32.mrf.mxu0
    %v851 = vadd.f32 %v810, %v850
    %v852 = vpop.f32.mrf.mxu0
    %v853 = vadd.f32 %v812, %v852
    %v854 = vpop.f32.mrf.mxu0
    %v855 = vpop.f32.mrf.mxu0
    %856 = vdwg.mxu0
    %v857 = vmax.f32 %v851, 0.0
    %v858 = vmax.f32 %v853, 0.0
    %v859 = vpack.c.bf16 %v857, %v857
    %v860 = vpack.c.bf16 %v858, %v858
    %v861 = vld [vmem:[%s3] sm:$0xf]
    %v862 = vld [vmem:[%s3 + $0x4] sm:$0xf]
    %v863 = vld [vmem:[%s3 + $0x8] sm:$0xf]
    %v864 = vld [vmem:[%s3 + $0xc] sm:$0xf]
    %v865 = vld [vmem:[%s3 + $0x10] sm:$0xf]
    %v866 = vld [vmem:[%s3 + $0x14] sm:$0xf]
    %v867 = vld [vmem:[%s3 + $0x18] sm:$0xf]
    %v868 = vld [vmem:[%s3 + $0x1c] sm:$0xf]
    %v869 = vld [vmem:[%s3 + $0x20] sm:$0xf]
    %v870 = vld [vmem:[%s3 + $0x24] sm:$0xf]
    %v871 = vld [vmem:[%s3 + $0x28] sm:$0xf]
    %v872 = vld [vmem:[%s3 + $0x2c] sm:$0xf]
    %v873 = vld [vmem:[%s3 + $0x30] sm:$0xf]
    %v874 = vld [vmem:[%s3 + $0x34] sm:$0xf]
    %v875 = vld [vmem:[%s3 + $0x38] sm:$0xf]
    %v876 = vld [vmem:[%s3 + $0x3c] sm:$0xf]
    %v877 = vld [vmem:[%s3 + $0x40] sm:$0xf]
    %v878 = vld [vmem:[%s3 + $0x44] sm:$0xf]
    %v879 = vld [vmem:[%s3 + $0x48] sm:$0xf]
    %v880 = vld [vmem:[%s3 + $0x4c] sm:$0xf]
    %v881 = vld [vmem:[%s3 + $0x50] sm:$0xf]
    %v882 = vld [vmem:[%s3 + $0x54] sm:$0xf]
    %v883 = vld [vmem:[%s3 + $0x58] sm:$0xf]
    %v884 = vld [vmem:[%s3 + $0x5c] sm:$0xf]
    %v885 = vld [vmem:[%s3 + $0x60] sm:$0xf]
    %v886 = vld [vmem:[%s3 + $0x64] sm:$0xf]
    %v887 = vld [vmem:[%s3 + $0x68] sm:$0xf]
    %v888 = vld [vmem:[%s3 + $0x6c] sm:$0xf]
    %v889 = vld [vmem:[%s3 + $0x70] sm:$0xf]
    %v890 = vld [vmem:[%s3 + $0x74] sm:$0xf]
    %v891 = vld [vmem:[%s3 + $0x78] sm:$0xf]
    %v892 = vld [vmem:[%s3 + $0x7c] sm:$0xf]
    %v893 = vld [vmem:[%s4] sm:$0x1]
    %v895 = vlaneseq
    %v896 = vshrl.u32 %v895, 7
    %v897 = vsub.s32 0, %v896
    %v898 = vrot.slane %v893, %v897
    %v932 = vunpack.c.l.b16 %v861
    %v933 = vunpack.c.l.b16 %v862
    %v934 = vunpack.c.l.b16 %v863
    %v935 = vunpack.c.l.b16 %v864
    %v936 = vunpack.c.l.b16 %v865
    %v937 = vunpack.c.l.b16 %v866
    %v938 = vunpack.c.l.b16 %v867
    %v939 = vunpack.c.l.b16 %v868
    %v940 = vunpack.c.l.b16 %v869
    %v941 = vunpack.c.l.b16 %v870
    %v942 = vunpack.c.l.b16 %v871
    %v943 = vunpack.c.l.b16 %v872
    %v944 = vunpack.c.l.b16 %v873
    %v945 = vunpack.c.l.b16 %v874
    %v946 = vunpack.c.l.b16 %v875
    %v947 = vunpack.c.l.b16 %v876
    %v948 = vunpack.c.l.b16 %v877
    %v949 = vunpack.c.l.b16 %v878
    %v950 = vunpack.c.l.b16 %v879
    %v951 = vunpack.c.l.b16 %v880
    %v952 = vunpack.c.l.b16 %v881
    %v953 = vunpack.c.l.b16 %v882
    %v954 = vunpack.c.l.b16 %v883
    %v955 = vunpack.c.l.b16 %v884
    %v956 = vunpack.c.l.b16 %v885
    %v957 = vunpack.c.l.b16 %v886
    %v958 = vunpack.c.l.b16 %v887
    %v959 = vunpack.c.l.b16 %v888
    %v960 = vunpack.c.l.b16 %v889
    %v961 = vunpack.c.l.b16 %v890
    %v962 = vunpack.c.l.b16 %v891
    %v963 = vunpack.c.l.b16 %v892
    %v964 = vpack.c.b16 %v933, %v932
    %v965 = vpack.c.b16 %v935, %v934
    %v966 = vpack.c.b16 %v937, %v936
    %v967 = vpack.c.b16 %v939, %v938
    %v968 = vpack.c.b16 %v941, %v940
    %v969 = vpack.c.b16 %v943, %v942
    %v970 = vpack.c.b16 %v945, %v944
    %v971 = vpack.c.b16 %v947, %v946
    %v972 = vpack.c.b16 %v949, %v948
    %v973 = vpack.c.b16 %v951, %v950
    %v974 = vpack.c.b16 %v953, %v952
    %v975 = vpack.c.b16 %v955, %v954
    %v976 = vpack.c.b16 %v957, %v956
    %v977 = vpack.c.b16 %v959, %v958
    %v978 = vpack.c.b16 %v961, %v960
    %v979 = vpack.c.b16 %v963, %v962
    %996 = vmatprep.subr.bf16.mxu0 0
    %997 = vmatpush1.bf16.msra.mxu0 %v971
    %998 = vmatprep.subr.bf16.mxu0 0
    %999 = vmatpush1.bf16.msra.mxu0 %v970
    %1000 = vmatprep.subr.bf16.mxu0 0
    %1001 = vmatpush1.bf16.msra.mxu0 %v969
    %1002 = vmatprep.subr.bf16.mxu0 0
    %1003 = vmatpush1.bf16.msra.mxu0 %v968
    %1004 = vmatprep.subr.bf16.mxu0 0
    %1005 = vmatpush1.bf16.msra.mxu0 %v967
    %1006 = vmatprep.subr.bf16.mxu0 0
    %1007 = vmatpush1.bf16.msra.mxu0 %v966
    %1008 = vmatprep.subr.bf16.mxu0 0
    %1009 = vmatpush1.bf16.msra.mxu0 %v965
    %1010 = vmatprep.subr.bf16.mxu0 0
    %1011 = vmatpush1.bf16.msra.mxu0 %v964
    %1012 = vmatprep.subr.bf16.mxu0 0
    %1013 = vmatpush2.bf16.msra.mxu0 %v979
    %1014 = vmatprep.subr.bf16.mxu0 0
    %1015 = vmatpush2.bf16.msra.mxu0 %v978
    %1016 = vmatprep.subr.bf16.mxu0 0
    %1017 = vmatpush2.bf16.msra.mxu0 %v977
    %1018 = vmatprep.subr.bf16.mxu0 0
    %1019 = vmatpush2.bf16.msra.mxu0 %v976
    %1020 = vmatprep.subr.bf16.mxu0 0
    %1021 = vmatpush2.bf16.msra.mxu0 %v975
    %1022 = vmatprep.subr.bf16.mxu0 0
    %1023 = vmatpush2.bf16.msra.mxu0 %v974
    %1024 = vmatprep.subr.bf16.mxu0 0
    %1025 = vmatpush2.bf16.msra.mxu0 %v973
    %1026 = vmatprep.subr.bf16.mxu0 0
    %1027 = vmatpush2.bf16.msra.mxu0 %v972
    %1028 = vmatprep.mubr.bf16.mxu0 %v860
    %1029 = vmatmul.mubr.bf16.gmra.mxu0 %v859
    %v1030 = vpop.f32.mrf.mxu0
    %v1031 = vadd.f32 %v898, %v1030
    %v1032 = vpop.f32.mrf.mxu0
    %v1033 = vpop.f32.mrf.mxu0
    %v1034 = vpop.f32.mrf.mxu0
    %1035 = vdwg.mxu0
    %v1036 = vmax.f32 %v1031, 0.0
    %v1037 = vld [vmem:[%s5] sm:$0x1]
    %s1038 = sld [smem:[#allocation2]]
    %v1039 = vstv %s1038
    %vm1040 = vcmask 523264
    %v1042 = vsel %vm1040, %v1037, 0
    %v1045 = vsel %vm1040, %v1036, 0
    %1047 = vmatprep.subr.mxu0 0.0
    %1048 = vmatpush1.xpose.msra.mxu0 0.0
    %1049 = vmatprep.subr.mxu0 0.0
    %1050 = vmatpush1.xpose.msra.mxu0 0.0
    %1051 = vmatprep.subr.mxu0 0.0
    %1052 = vmatpush1.xpose.msra.mxu0 0.0
    %1053 = vmatprep.subr.mxu0 0.0
    %1054 = vmatpush1.xpose.msra.mxu0 0.0
    %1055 = vmatprep.subr.mxu0 0.0
    %1056 = vmatpush1.xpose.msra.mxu0 0.0
    %1057 = vmatprep.subr.mxu0 0.0
    %1058 = vmatpush1.xpose.msra.mxu0 0.0
    %1059 = vmatprep.subr.mxu0 0.0
    %1060 = vmatpush1.xpose.msra.mxu0 0.0
    %1061 = vmatprep.subr.mxu0 0.0
    %1062 = vmatpush1.xpose.msra.mxu0 0.0
    %1063 = vmatprep.subr.mxu0 0.0
    %1064 = vmatpush1.xpose.msra.mxu0 0.0
    %1065 = vmatprep.subr.mxu0 0.0
    %1066 = vmatpush1.xpose.msra.mxu0 0.0
    %1067 = vmatprep.subr.mxu0 0.0
    %1068 = vmatpush1.xpose.msra.mxu0 0.0
    %1069 = vmatprep.subr.mxu0 0.0
    %1070 = vmatpush1.xpose.msra.mxu0 0.0
    %1071 = vmatprep.subr.mxu0 0.0
    %1072 = vmatpush1.xpose.msra.mxu0 0.0
    %1073 = vmatprep.subr.mxu0 0.0
    %1074 = vmatpush1.xpose.msra.mxu0 0.0
    %1075 = vmatprep.subr.mxu0 0.0
    %1076 = vmatpush1.xpose.msra.mxu0 0.0
    %1077 = vmatprep.subr.mxu0 0.0
    %1078 = vmatpush1.xpose.msra.mxu0 %v1045
    %1079 = vmatprep.subr.mxu0 0.0
    %1080 = vmatpush2.xpose.msra.mxu0 0.0
    %1081 = vmatprep.subr.mxu0 0.0
    %1082 = vmatpush2.xpose.msra.mxu0 0.0
    %1083 = vmatprep.subr.mxu0 0.0
    %1084 = vmatpush2.xpose.msra.mxu0 0.0
    %1085 = vmatprep.subr.mxu0 0.0
    %1086 = vmatpush2.xpose.msra.mxu0 0.0
    %1087 = vmatprep.subr.mxu0 0.0
    %1088 = vmatpush2.xpose.msra.mxu0 0.0
    %1089 = vmatprep.subr.mxu0 0.0
    %1090 = vmatpush2.xpose.msra.mxu0 0.0
    %1091 = vmatprep.subr.mxu0 0.0
    %1092 = vmatpush2.xpose.msra.mxu0 0.0
    %1093 = vmatprep.subr.mxu0 0.0
    %1094 = vmatpush2.xpose.msra.mxu0 0.0
    %1095 = vmatprep.subr.mxu0 0.0
    %1096 = vmatpush2.xpose.msra.mxu0 0.0
    %1097 = vmatprep.subr.mxu0 0.0
    %1098 = vmatpush2.xpose.msra.mxu0 0.0
    %1099 = vmatprep.subr.mxu0 0.0
    %1100 = vmatpush2.xpose.msra.mxu0 0.0
    %1101 = vmatprep.subr.mxu0 0.0
    %1102 = vmatpush2.xpose.msra.mxu0 0.0
    %1103 = vmatprep.subr.mxu0 0.0
    %1104 = vmatpush2.xpose.msra.mxu0 0.0
    %1105 = vmatprep.subr.mxu0 0.0
    %1106 = vmatpush2.xpose.msra.mxu0 0.0
    %1107 = vmatprep.subr.mxu0 0.0
    %1108 = vmatpush2.xpose.msra.mxu0 0.0
    %1109 = vmatprep.subr.mxu0 0.0
    %1110 = vmatpush2.xpose.msra.mxu0 0.0
    %1111 = vmatprep.mubr.f32.mxu0 0.0
    %1112 = vmatmul.mubr.f32.gmra.mxu0 %v1042
    %v1113 = vpop.f32.mrf.mxu0
    %v1114 = vadd.f32 %v1039, %v1113
    %v1115 = vpop.f32.mrf.mxu0
    %1116 = vdwg.mxu0
    %vm1117 = vcmask 57344
    %1118 = vst.msk [vmem:[#allocation6] sm:$0x1] %vm1117, %v1114
    // Predicated region
    $region34: #{lers_recommendation_forward.1} parent=1 // pred_check
      _
    $region35: #{lers_recommendation_forward.1} parent=1 // pred_check_branch
      %1120 = sbr.rel (0) target = $region37
    $region36: #{lers_recommendation_forward.1} parent=1 // pred_region
      %s1122 = ssub.s32 16, 16
      %1123 = vsyncadd [#allocation5], %s1122
      %s1125 = sshll.u32 [#allocation6], 4
      %s1126 = int_to_ptr.vmem [resolvable:$true] %s1125
      %1128 = dma.vmem_to_hbm [thread:$0]  %s1126, 16, %s7, [#allocation5]
    $region37: #{lers_recommendation_forward.1} parent=1 // pred_fallthru
      _
    // Predicated region
    $region38: #{lers_recommendation_forward.1} parent=1 // pred_check
      _
    $region39: #{lers_recommendation_forward.1} parent=1 // pred_check_branch
      %1130 = sbr.rel (0) target = $region41
    $region40: #{lers_recommendation_forward.1} parent=1 // pred_region
      %1131 = dma.done [#allocation5], 16
    $region41: #{lers_recommendation_forward.1} parent=1 // pred_fallthru
      _
    %1132 = vsyncpa [#allocation4], 1
    %1133 = vsyncpa [#allocation5], 1

</llo_original>
